<compile_context>
chip_gen: v6e
topology: v6e:2x2x1
jax: 0.10.0
libtpu: 0.0.40
codegen_flags: <defaults>
</compile_context>

<pallas_src>
import functools

import jax
import jax.numpy as jnp
from jax import lax
from jax.experimental import pallas as pl
from jax.experimental.pallas import tpu as pltpu


# ----------------------------- glue helpers ------------------------------- #

def sub_filter_start_end(max_kernel_size, kernel_size):
    center = max_kernel_size // 2
    dev = kernel_size // 2
    start = center - dev
    end = start + kernel_size
    return start, end


def get_same_padding(kernel_size):
    assert kernel_size % 2 == 1, "same-padding helper assumes odd kernel"
    return kernel_size // 2


def get_active_filter(base_weight, in_channels, kernel_size, groups,
                      max_kernel_size):
    """JAX port of DynamicGroupConv1d.get_active_filter (WS_EPS=None path)."""
    start, end = sub_filter_start_end(max_kernel_size, kernel_size)
    filters = base_weight[:, :, start:end]            # (C_out, C_in/min_g, ks)
    sub_filters = jnp.split(filters, groups, axis=0)  # chunk along out-channels
    sub_in_channels = in_channels // groups
    sub_ratio = filters.shape[1] // sub_in_channels
    crops = []
    for i, sf in enumerate(sub_filters):
        part_id = i % sub_ratio
        s = part_id * sub_in_channels
        crops.append(sf[:, s:s + sub_in_channels, :])
    return jnp.concatenate(crops, axis=0)             # (C_out, C_in/groups, ks)


def _round_up(a, b):
    return (a + b - 1) // b * b


def _vmem_budget():
    """Generation-aware VMEM budgets (128 MiB v5e/v6e, 64 MiB per-TC v7x)."""
    cap = None
    try:
        cap = getattr(pltpu.get_tpu_info(), "vmem_capacity_bytes", None)
    except Exception:
        cap = None
    if not cap:
        cap = 64 * 1024 * 1024                   # conservative (v7x per-TC size)
    limit = min(int(cap) * 3 // 4, 96 * 1024 * 1024)   # requested scoped limit
    budget = limit // 2                          # per-tile estimate cap
    return int(limit), int(budget)


# ----------------------------- Pallas kernel ------------------------------ #

def _grouped_conv1d_kernel(x_ref, w_ref, o_ref, patches_ref, *,
                           K, dilation, cin_blk, build_once, use_mask,
                           L_valid, padding, L_seg):
    """One (batch-tile, out-channel-block) grid step as a single MXU matmul.

    x_ref:       (cin_blk, T)       lane-dense batch tile, T = bn * L_seg
    w_ref:       (co_blk, K*cin_blk) flattened filter, column order (k, ci)
    o_ref:       (co_blk, T)
    patches_ref: (K*cin_blk, T)     VMEM scratch holding the im2col patches
    """

    def build_patches():
        x = x_ref[...]
        T = x.shape[1]
        if use_mask:
            # Fallback (halo does not fit the per-segment slack): lane position
            # within its segment, generated in-kernel (no pos input / DMA).
            pos = lax.broadcasted_iota(jnp.int32, (1, T), 1)
            if T != L_seg:
                pos = pos % L_seg
        for k in range(K):                          # static unroll over taps
            if use_mask:
                s = padding - k * dilation
                xk = x if s % T == 0 else pltpu.roll(x, shift=s % T, axis=1)
                valid = (pos >= max(s, 0)) & (pos < L_valid + s)
                xk = jnp.where(valid, xk, jnp.zeros_like(xk))
            else:
                # Fast path: halo is baked into the lane layout, so a pure XLU
                # roll produces tap k (no compares / selects on the VPU).
                sh = (-k * dilation) % T
                xk = x if sh == 0 else pltpu.roll(x, shift=sh, axis=1)
            # Aligned sublane store into the patches scratch (row block k).
            patches_ref[k * cin_blk:(k + 1) * cin_blk, :] = xk

    if build_once:
        # Dense path with several out-channel blocks: patches depend only on
        # the batch tile; build them once per batch tile (the out-channel axis
        # is the inner, sequentially-executed grid axis in that case).
        @pl.when(pl.program_id(1) == 0)
        def _():
            build_patches()
    else:
        build_patches()

    # One contraction over K*cin_blk on the MXU; f32 accumulation regardless of
    # operand dtype.
    acc = jnp.dot(w_ref[...], patches_ref[...],
                  preferred_element_type=jnp.float32)
    o_ref[...] = acc.astype(o_ref.dtype)            # lane-dense store


# ------------------------------- wrapper ----------------------------------- #

def grouped_conv1d_pallas(x, w, *, groups, padding, dilation=1, stride=1,
                          compute_dtype=None, lane_target=4096):
    """F.conv1d(x, w, None, stride, padding, dilation, groups) on TPU."""
    N, C_in, L = x.shape
    C_out, cin_pg, K = w.shape
    assert C_in % groups == 0 and C_out % groups == 0
    assert cin_pg == C_in // groups
    cout_pg = C_out // groups

    # Dense (stride-1) output length; strided output is a wrapper-side
    # subsample of it (see stride TODO at the top of the file).
    L1 = L + 2 * padding - dilation * (K - 1)
    assert L1 >= 1, "kernel does not fit into the padded input"

    out_dtype = x.dtype
    cdt = jnp.dtype(out_dtype if compute_dtype is None else compute_dtype)
    in_b = cdt.itemsize
    out_b = jnp.dtype(out_dtype).itemsize
    sub_in = 8 * max(1, 4 // in_b)        # sublane tile rows: 8 f32 / 16 bf16

    # -- segment layout: each batch element owns L_seg lanes; on the fast path
    #    the real data sits at lane offset `padding`, so the zero halo comes
    #    for free from the in-kernel roll (no masks, no pos vector).
    L_seg = _round_up(max(L, L1), 128)
    use_mask = (L + 2 * padding) > L_seg  # rare: halo does not fit the slack
    left = 0 if use_mask else padding
    assert max(padding, dilation * (K - 1)) < L_seg   # taps never wrap a segment

    # -- path selection: one dense block-diagonal matmul vs. per-group matmuls.
    #    The dense form is optimal while K*C_in fits one MXU contraction pass
    #    (<=256 on v6e/v7x; a dense pass <=256 costs the same as a padded
    #    per-group pass).  Beyond that, with groups > 1, it would burn
    #    (groups-1)/groups of the MXU on structural zeros.
    per_group = (groups > 1 and K * C_in > 256
                 and cin_pg % 32 == 0 and cout_pg % 32 == 0)

    if per_group:
        cin_blk = cin_pg
        C_in_pad = C_in
        co_tile, n_co, C_out_p = cout_pg, groups, C_out
        # rows: (group, co-within-group); cols: (k, ci-within-group)
        w2d = jnp.transpose(w, (0, 2, 1)).reshape(C_out, K * cin_pg).astype(cdt)
    else:
        # grouped conv == dense conv with a block-diagonal filter; built with a
        # single broadcasted multiply (no python .at[].set() loop).  Channels
        # are padded to a sublane tile so every im2col store is tile-aligned.
        C_in_pad = _round_up(C_in, sub_in)
        cin_blk = C_in_pad
        co_tile = C_out if C_out <= 256 else 256        # MXU output height
        C_out_p = _round_up(C_out, co_tile)
        n_co = C_out_p // co_tile
        w_g = w.reshape(groups, cout_pg, cin_pg, K)
        eye = jnp.eye(groups, dtype=w.dtype)
        w_bd = (w_g[:, :, None, :, :] * eye[:, None, :, None, None]
                ).reshape(C_out, C_in, K)
        w_bd = jnp.pad(w_bd, ((0, C_out_p - C_out),
                              (0, C_in_pad - C_in), (0, 0)))
        w2d = jnp.transpose(w_bd, (0, 2, 1)).reshape(
            C_out_p, K * C_in_pad).astype(cdt)

    Kc = K * cin_blk

    # -- batch-tile size: generation-aware VMEM budget; also guarantee >=2 grid
    #    steps along batch whenever N > 1 so v7x's second TensorCore gets work.
    vmem_limit, budget = _vmem_budget()

    def _tile_bytes(b):
        t = b * L_seg
        return (2 * cin_blk * t * in_b        # x (double-buffered)
                + Kc * t * in_b               # patches scratch
                + 2 * co_tile * t * out_b     # out (double-buffered)
                + co_tile * t * 4)            # f32 matmul result

    bn = max(1, min(N, lane_target // L_seg))
    while bn > 1 and _tile_bytes(bn) > budget:
        bn -= 1
    if N > 1:
        bn = min(bn, -(-N // 2))              # at least 2 batch grid steps
    N_p = _round_up(N, bn)
    T = bn * L_seg
    n_b = N_p // bn

    # Layout plumbing (one transpose/pad copy of x); the conv halo lives in the
    # per-segment lane slack, never as a padded HBM copy of the conv axis.
    x_t = jnp.transpose(x, (1, 0, 2))                     # (C_in, N, L)
    x_t = jnp.pad(x_t, ((0, C_in_pad - C_in), (0, N_p - N),
                        (left, L_seg - L - left)))
    x_flat = x_t.reshape(C_in_pad, N_p * L_seg).astype(cdt)

    build_once = (not per_group) and n_co > 1

    kernel = functools.partial(
        _grouped_conv1d_kernel, K=K, dilation=dilation, cin_blk=cin_blk,
        build_once=build_once, use_mask=use_mask, L_valid=L, padding=padding,
        L_seg=L_seg)

    if per_group:
        x_spec = pl.BlockSpec((cin_blk, T), lambda i, c: (c, i))
    else:
        x_spec = pl.BlockSpec((cin_blk, T), lambda i, c: (0, i))

    out_flat = pl.pallas_call(
        kernel,
        out_shape=jax.ShapeDtypeStruct((C_out_p, N_p * L_seg), out_dtype),
        grid=(n_b, n_co),
        in_specs=[
            x_spec,
            # constant along the batch axis -> weight block stays resident
            pl.BlockSpec((co_tile, Kc), lambda i, c: (c, 0)),
        ],
        out_specs=pl.BlockSpec((co_tile, T), lambda i, c: (c, i)),
        scratch_shapes=[pltpu.VMEM((Kc, T), cdt)],
        compiler_params=pltpu.CompilerParams(
            dimension_semantics=(
                "parallel",
                # the out-channel axis must run sequentially when patches are
                # built once per batch tile and reused across its steps
                "arbitrary" if build_once else "parallel"),
            vmem_limit_bytes=vmem_limit),
    )(x_flat, w2d)

    out = out_flat.reshape(C_out_p, N_p, L_seg)[:C_out, :N, :L1:stride]
    return jnp.transpose(out, (1, 0, 2))                  # (N, C_out, L_out)


# --------------------------- module equivalent ----------------------------- #

class DynamicGroupConv1dPallas:
    """JAX/Pallas port of soteria.dynn.dynamic1d.DynamicGroupConv1d forward."""

    def __init__(self, in_channels, out_channels, kernel_size_list, groups_list,
                 stride=1, dilation=1, WS_EPS=None, *, key, compute_dtype=None):
        assert WS_EPS is None  # TODO(synk): weight-standardization path not ported
        self.in_channels = in_channels
        self.out_channels = out_channels
        self.kernel_size_list = kernel_size_list
        self.groups_list = groups_list
        self.stride = stride
        self.dilation = dilation
        self.compute_dtype = compute_dtype
        self.max_kernel_size = max(kernel_size_list)
        self.min_groups = min(groups_list)
        self.active_kernel_size = self.max_kernel_size
        self.active_groups = self.min_groups
        # base nn.Conv1d weight: (C_out, C_in // min_groups, max_kernel_size)
        wshape = (out_channels, in_channels // self.min_groups,
                  self.max_kernel_size)
        self.weight = jax.random.normal(key, wshape, dtype=jnp.float32) * 0.1

    def __call__(self, x, kernel_size=None, groups=None, compute_dtype=None):
        if kernel_size is None:
            kernel_size = self.active_kernel_size
        if groups is None:
            groups = self.active_groups
        if compute_dtype is None:
            compute_dtype = self.compute_dtype
        filters = get_active_filter(self.weight, self.in_channels,
                                    kernel_size, groups, self.max_kernel_size)
        padding = get_same_padding(kernel_size)
        return grouped_conv1d_pallas(x, filters, groups=groups,
                                     padding=padding, dilation=self.dilation,
                                     stride=self.stride,
                                     compute_dtype=compute_dtype)


# --------------------------------- main ------------------------------------ #

def _conv1d_reference(x, w, groups, padding, dilation, stride):
    return jax.lax.conv_general_dilated(
        x, w,
        window_strides=(stride,),
        padding=[(padding, padding)],
        rhs_dilation=(dilation,),
        dimension_numbers=("NCW", "OIW", "NCW"),
        feature_group_count=groups,
    )


if __name__ == "__main__":
    key = jax.random.PRNGKey(0)
    kx, kw, kx2, kw2 = jax.random.split(key, 4)

    ok = True

    # --- small module exercising the dense block-diagonal path ------------- #
    N, C_in, C_out, L = 2, 8, 8, 16
    module = DynamicGroupConv1dPallas(
        in_channels=C_in, out_channels=C_out,
        kernel_size_list=[3, 5], groups_list=[2, 4],
        stride=1, dilation=1, WS_EPS=None, key=kw)
    x = jax.random.normal(kx, (N, C_in, L), dtype=jnp.float32)

    # default active config (kernel=5, groups=2) and a dynamic one (3, 4)
    for ks, g in [(None, None), (3, 4)]:
        y = jax.block_until_ready(module(x, kernel_size=ks, groups=g))
        ks_eff = module.active_kernel_size if ks is None else ks
        g_eff = module.active_groups if g is None else g
        filt = get_active_filter(module.weight, C_in, ks_eff, g_eff,
                                 module.max_kernel_size)
        y_ref = _conv1d_reference(x, filt, g_eff, get_same_padding(ks_eff),
                                  module.dilation, module.stride)
        ok = ok and (y.shape == y_ref.shape)
        ok = ok and bool(jnp.allclose(y, y_ref, atol=1e-4, rtol=1e-4))

    # bf16-operand / f32-accumulate MXU path (looser tolerance vs f32 reference)
    y_bf16 = jax.block_until_ready(module(x, compute_dtype=jnp.bfloat16))
    filt = get_active_filter(module.weight, C_in, module.active_kernel_size,
                             module.active_groups, module.max_kernel_size)
    y_ref = _conv1d_reference(x, filt, module.active_groups,
                              get_same_padding(module.active_kernel_size),
                              module.dilation, module.stride)
    ok = ok and bool(jnp.allclose(y_bf16, y_ref, atol=5e-2, rtol=1e-1))

    # --- wider layer exercising the per-group (no block-diag zeros) path --- #
    Nw, Cw, Lw = 2, 128, 16
    module_w = DynamicGroupConv1dPallas(
        in_channels=Cw, out_channels=Cw, kernel_size_list=[3], groups_list=[4],
        stride=1, dilation=1, WS_EPS=None, key=kw2)
    xw = jax.random.normal(kx2, (Nw, Cw, Lw), dtype=jnp.float32)
    yw = jax.block_until_ready(module_w(xw))
    filt_w = get_active_filter(module_w.weight, Cw, 3, 4, 3)
    yw_ref = _conv1d_reference(xw, filt_w, 4, get_same_padding(3), 1, 1)
    ok = ok and (yw.shape == yw_ref.shape)
    ok = ok and bool(jnp.allclose(yw, yw_ref, atol=2e-4, rtol=2e-4))

    if ok:
        print("KERNEL_OK")
    else:
        print("KERNEL_MISMATCH")
</pallas_src>

<mosaic_0001>
module attributes {stable_mosaic.version = 11 : i64} {
  func.func @_grouped_conv1d_kernel(%arg0: i32, %arg1: i32, %arg2: memref<8x128xf32, #tpu.memory_space<vmem>>, %arg3: memref<8x40xf32, #tpu.memory_space<vmem>>, %arg4: memref<8x128xf32, #tpu.memory_space<vmem>>, %arg5: memref<40x128xf32, #tpu.memory_space<vmem>>) attributes {dimension_semantics = [#tpu.dimension_semantics<parallel>, #tpu.dimension_semantics<parallel>], iteration_bounds = array<i64: 2, 1>, scalar_prefetch = 0 : i64, scratch_operands = 1 : i64, tpu.core_type = #tpu.core_type<tc>, window_params = [{transform_indices = @transform_0, window_bounds = array<i64: 8, 128>}, {transform_indices = @transform_1, window_bounds = array<i64: 8, 40>}, {transform_indices = @transform_2, window_bounds = array<i64: 8, 128>}]} {
    %c0 = arith.constant 0 : index
    %c0_0 = arith.constant 0 : index
    %0 = vector.load %arg2[%c0, %c0_0] : memref<8x128xf32, #tpu.memory_space<vmem>>, vector<8x128xf32>
    %c0_1 = arith.constant 0 : index
    %c0_2 = arith.constant 0 : index
    %1 = vector.load %arg5[%c0_1, %c0_2] : memref<40x128xf32, #tpu.memory_space<vmem>>, vector<8x128xf32>
    tpu.vector_store %arg5[%c0_1, %c0_2], %0 {strides = array<i32>} : memref<40x128xf32, #tpu.memory_space<vmem>>, vector<8x128xf32>,
    %c127_i32 = arith.constant 127 : i32
    %2 = tpu.dynamic_rotate %0 by %c127_i32 dim 1 : vector<8x128xf32>, i32 -> vector<8x128xf32>
    %c8 = arith.constant 8 : index
    %c0_3 = arith.constant 0 : index
    %3 = vector.load %arg5[%c8, %c0_3] : memref<40x128xf32, #tpu.memory_space<vmem>>, vector<8x128xf32>
    tpu.vector_store %arg5[%c8, %c0_3], %2 {strides = array<i32>} : memref<40x128xf32, #tpu.memory_space<vmem>>, vector<8x128xf32>,
    %c126_i32 = arith.constant 126 : i32
    %4 = tpu.dynamic_rotate %0 by %c126_i32 dim 1 : vector<8x128xf32>, i32 -> vector<8x128xf32>
    %c16 = arith.constant 16 : index
    %c0_4 = arith.constant 0 : index
    %5 = vector.load %arg5[%c16, %c0_4] : memref<40x128xf32, #tpu.memory_space<vmem>>, vector<8x128xf32>
    tpu.vector_store %arg5[%c16, %c0_4], %4 {strides = array<i32>} : memref<40x128xf32, #tpu.memory_space<vmem>>, vector<8x128xf32>,
    %c125_i32 = arith.constant 125 : i32
    %6 = tpu.dynamic_rotate %0 by %c125_i32 dim 1 : vector<8x128xf32>, i32 -> vector<8x128xf32>
    %c24 = arith.constant 24 : index
    %c0_5 = arith.constant 0 : index
    %7 = vector.load %arg5[%c24, %c0_5] : memref<40x128xf32, #tpu.memory_space<vmem>>, vector<8x128xf32>
    tpu.vector_store %arg5[%c24, %c0_5], %6 {strides = array<i32>} : memref<40x128xf32, #tpu.memory_space<vmem>>, vector<8x128xf32>,
    %c124_i32 = arith.constant 124 : i32
    %8 = tpu.dynamic_rotate %0 by %c124_i32 dim 1 : vector<8x128xf32>, i32 -> vector<8x128xf32>
    %c32 = arith.constant 32 : index
    %c0_6 = arith.constant 0 : index
    %9 = vector.load %arg5[%c32, %c0_6] : memref<40x128xf32, #tpu.memory_space<vmem>>, vector<8x128xf32>
    tpu.vector_store %arg5[%c32, %c0_6], %8 {strides = array<i32>} : memref<40x128xf32, #tpu.memory_space<vmem>>, vector<8x128xf32>,
    %c0_7 = arith.constant 0 : index
    %c0_8 = arith.constant 0 : index
    %10 = vector.load %arg3[%c0_7, %c0_8] : memref<8x40xf32, #tpu.memory_space<vmem>>, vector<8x40xf32>
    %c0_9 = arith.constant 0 : index
    %c0_10 = arith.constant 0 : index
    %11 = vector.load %arg5[%c0_9, %c0_10] : memref<40x128xf32, #tpu.memory_space<vmem>>, vector<40x128xf32>
    %cst = arith.constant dense<0.000000e+00> : vector<8x128xf32>
    %12 = tpu.matmul %10, %11, %cst {dimension_numbers = #tpu.dot_dimension_numbers<[1], [0], [0], [1], [0, 0, 1, 1], [], []>} : vector<8x40xf32>, vector<40x128xf32>, vector<8x128xf32> -> vector<8x128xf32>
    %c0_11 = arith.constant 0 : index
    %c0_12 = arith.constant 0 : index
    %13 = vector.load %arg4[%c0_11, %c0_12] : memref<8x128xf32, #tpu.memory_space<vmem>>, vector<8x128xf32>
    tpu.vector_store %arg4[%c0_11, %c0_12], %12 {strides = array<i32>} : memref<8x128xf32, #tpu.memory_space<vmem>>, vector<8x128xf32>,
    return
  }
  func.func @transform_0(%arg0: i32, %arg1: i32) -> (i32, i32) {
    %c0_i32 = arith.constant 0 : i32
    %c0_i32_0 = arith.constant 0 : i32
    return %c0_i32, %arg0 : i32, i32
  }
  func.func @transform_1(%arg0: i32, %arg1: i32) -> (i32, i32) {
    %c0_i32 = arith.constant 0 : i32
    %c0_i32_0 = arith.constant 0 : i32
    return %arg1, %c0_i32 : i32, i32
  }
  func.func @transform_2(%arg0: i32, %arg1: i32) -> (i32, i32) {
    %c0_i32 = arith.constant 0 : i32
    return %arg1, %arg0 : i32, i32
  }
}

</mosaic_0001>

<llo_original>
// kernel: tpu_custom_call.1
$region0: #{tpu_custom_call.1}
  #allocation0 [shape = 'u32[]', space=smem, size = 0x4, offset = 0x4, fixed_abs, tag = 'smem constant byte address 0x4 - core index']
  #allocation1 [shape = 'u32[144,128]{1,0:T(1,128)}', space=vmem, size = 0x12000, scoped, tag = 'internal scratch']
  #allocation2 [shape = 'f32[40,128]{1,0:T(8,128)}', space=vmem, size = 0x5000, scoped, tag = 'scratch operand']
  %s0 = inlined_call_operand.hbm [shape: f32[8,256], index: 0, kind: input, shape index: {}]
  %s1 = inlined_call_operand.hbm [shape: f32[8,40], index: 1, kind: input, shape index: {}]
  %s2 = inlined_call_operand.hbm [shape: f32[8,256], index: 2, kind: output, shape index: {}]
  %s3 = sld [smem:[#allocation0]]
  $region49: #{tpu_custom_call.1} parent=0
    _
  %s5 = ssub.s32 1, %s3
  %s6 = scalar_select 0, %s5, %s3
  $region1: #{tpu_custom_call.1} parent=0
    #allocation3 [shape = 'u8[8192]{0}', space=vmem, size = 0x2000, scoped, tag = 'input window, operand 0']
    #allocation4 [shape = 's32[2]{0}', space=sflag, size = 0x8, scoped, tag = 'scoped memory for tpu_custom_call.1']
    #allocation5 [shape = 's32[2]{0}', space=sflag, size = 0x8, scoped, tag = 'scoped memory for tpu_custom_call.1']
    #allocation6 [shape = 'u8[4096]{0}', space=vmem, size = 0x1000, scoped, tag = 'input window, operand 1, single buffered']
    #allocation7 [shape = 's32[1]{0}', space=sflag, size = 0x4, scoped, tag = 'scoped memory for tpu_custom_call.1']
    #allocation8 [shape = 'u8[8192]{0}', space=vmem, size = 0x2000, scoped, tag = 'output window, operand 0']
    %7 = vsyncpa [#allocation4], 0
    %s8 = scalar_lea.sflag [#allocation4], 1
    %9 = vsyncpa %s8, 0
    %10 = vsyncpa [#allocation7], 0
    %11 = vsyncpa [#allocation5], 0
    %s12 = scalar_lea.sflag [#allocation5], 1
    %13 = vsyncpa %s12, 0
    loop: start=0, step=1, limit=4
    $region2: #{tpu_custom_call.1} parent=1 // loop_pre_header
      _
    $region3: #{tpu_custom_call.1} parent=1 // loop_header
      %s15 = sphi 0, %s19
      %p16 = scmp.ge.s32.totalorder %s15, 4
      %s22 = sphi 0, %s34
      %s23 = sphi 0, %s30
      %s24 = sphi 0, %s22
      %s25 = sphi 0, %s23
      %s26 = sphi 0, %s24
      %s27 = sphi 0, %s25
      %s37 = sphi 0, %s39
      %s40 = sphi 0, %s37
      %s41 = sphi 0, %s40
      %s57 = sphi 0, %s41
      %s63 = sphi 0, %s65
      %s66 = sphi 0, %s63
      %s67 = sphi 0, %s66
      %s83 = sphi 0, %s67
      %s91 = sphi 0, %s93
      %s94 = sphi 0, %s91
      %s95 = sphi 0, %s94
      %s111 = sphi 0, %s95
    $region4: #{tpu_custom_call.1} parent=1 // loop_header_branch
      %18 = sbr.rel (%p16) target = $region8
    $region5: #{tpu_custom_call.1} parent=1 // loop_body
      %s20 = ssub.s32 %s15, 1
      %s21 = ssub.s32 %s15, 2
      %s28 = sadd.s32 1, %s23
      %p29 = scmp.ge.s32.totalorder %s28, 1
      %s30 = scalar_select %p29, 0, %s28
      %s31 = sadd.s32 1, %s22
      %s32 = scalar_select %p29, %s31, %s22
      %p33 = scmp.ge.s32.totalorder %s32, 2
      %s34 = scalar_select %p33, 0, %s32
      %s35 = ssub.s32 %s22, %s34
      %p36 = scmp.eq.s32.totalorder %s35, 0
      %s38 = sadd.s32 %s37, 1
      %s39 = scalar_select %p36, %s37, %s38
      %p42 = pneg %p36
      %p43 = scmp.eq.s32.totalorder %s15, 1
      %p44 = por %p42, %p43
      %p45 = scmp.ne.s32.totalorder %s37, %s40
      %p46 = scmp.eq.s32.totalorder %s15, 0
      %p47 = por %p45, %p46
      %p48 = scmp.ne.s32.totalorder %s37, %s40
      %p49 = scmp.eq.s32.totalorder %s20, 1
      %p50 = por %p48, %p49
      %p51 = scmp.ne.s32.totalorder %s40, %s41
      %p52 = scmp.eq.s32.totalorder %s20, 0
      %p53 = por %p51, %p52
      %p54 = scmp.ne.s32.totalorder %s40, %s41
      %p55 = scmp.eq.s32.totalorder %s21, 1
      %p56 = por %p54, %p55
      %p58 = scmp.ne.s32.totalorder %s41, %s57
      %p59 = scmp.eq.s32.totalorder %s21, 0
      %p60 = por %p58, %p59
      %s61 = ssub.s32 %s23, %s30
      %p62 = scmp.eq.s32.totalorder %s61, 0
      %s64 = sadd.s32 %s63, 1
      %s65 = scalar_select %p62, %s63, %s64
      %p68 = pneg %p62
      %p69 = scmp.eq.s32.totalorder %s15, 1
      %p70 = por %p68, %p69
      %p71 = scmp.ne.s32.totalorder %s63, %s66
      %p72 = scmp.eq.s32.totalorder %s15, 0
      %p73 = por %p71, %p72
      %p74 = scmp.ne.s32.totalorder %s63, %s66
      %p75 = scmp.eq.s32.totalorder %s20, 1
      %p76 = por %p74, %p75
      %p77 = scmp.ne.s32.totalorder %s66, %s67
      %p78 = scmp.eq.s32.totalorder %s20, 0
      %p79 = por %p77, %p78
      %p80 = scmp.ne.s32.totalorder %s66, %s67
      %p81 = scmp.eq.s32.totalorder %s21, 1
      %p82 = por %p80, %p81
      %p84 = scmp.ne.s32.totalorder %s67, %s83
      %p85 = scmp.eq.s32.totalorder %s21, 0
      %p86 = por %p84, %p85
      %s87 = ssub.s32 %s23, %s30
      %s88 = ssub.s32 %s22, %s34
      %s89 = sor.u32 %s87, %s88
      %p90 = scmp.eq.s32.totalorder %s89, 0
      %s92 = sadd.s32 %s91, 1
      %s93 = scalar_select %p90, %s91, %s92
      %p96 = pneg %p90
      %p97 = scmp.eq.s32.totalorder %s15, 1
      %p98 = por %p96, %p97
      %p99 = scmp.ne.s32.totalorder %s91, %s94
      %p100 = scmp.eq.s32.totalorder %s15, 0
      %p101 = por %p99, %p100
      %p102 = scmp.ne.s32.totalorder %s91, %s94
      %p103 = scmp.eq.s32.totalorder %s20, 1
      %p104 = por %p102, %p103
      %p105 = scmp.ne.s32.totalorder %s94, %s95
      %p106 = scmp.eq.s32.totalorder %s20, 0
      %p107 = por %p105, %p106
      %p108 = scmp.ne.s32.totalorder %s94, %s95
      %p109 = scmp.eq.s32.totalorder %s21, 1
      %p110 = por %p108, %p109
      %p112 = scmp.ne.s32.totalorder %s95, %s111
      %p113 = scmp.eq.s32.totalorder %s21, 0
      %p114 = por %p112, %p113
      %p115 = scmp.le.s32.totalorder 1, %s15
      %p116 = scmp.lt.s32.totalorder %s15, 3
      %p117 = pnand %p115, %p116
      %p118 = pneg %p117
      // Predicated region
      $region9: #{tpu_custom_call.1} parent=5 // pred_check
        _
      $region10: #{tpu_custom_call.1} parent=5 // pred_check_branch
        %120 = sbr.rel (%p117) target = $region12
      $region11: #{tpu_custom_call.1} parent=5 // pred_region
        %s121 = ssub.s32 %s15, 1
        // Predicated region
        $region13: #{tpu_custom_call.1} parent=11 // pred_check
          %p122 = pneg %p79
        $region14: #{tpu_custom_call.1} parent=11 // pred_check_branch
          %124 = sbr.rel (%p122) target = $region16
        $region15: #{tpu_custom_call.1} parent=11 // pred_region
          %s126 = ssub.s32 128, 128
          %127 = vsyncadd [#allocation7], %s126
          %s128 = smul.addr %s25, 128
          %s129 = scalar_lea.hbm %s1, %s128
          %s131 = sshll.u32 [#allocation6], 4
          %s132 = int_to_ptr.vmem [resolvable:$true] %s131
          %134 = dma.hbm_to_vmem [thread:$0]  %s129, 128, %s132, [#allocation7]
        $region16: #{tpu_custom_call.1} parent=11 // pred_fallthru
          _
      $region12: #{tpu_custom_call.1} parent=5 // pred_fallthru
        _
      %p135 = scmp.lt.s32.totalorder %s15, 2
      // Predicated region
      $region17: #{tpu_custom_call.1} parent=5 // pred_check
        %p136 = pneg %p135
      $region18: #{tpu_custom_call.1} parent=5 // pred_check_branch
        %138 = sbr.rel (%p136) target = $region20
      $region19: #{tpu_custom_call.1} parent=5 // pred_region
        // Predicated region
        $region21: #{tpu_custom_call.1} parent=19 // pred_check
          %p139 = pneg %p47
        $region22: #{tpu_custom_call.1} parent=19 // pred_check_branch
          %141 = sbr.rel (%p139) target = $region24
        $region23: #{tpu_custom_call.1} parent=19 // pred_region
          %s142 = sand.u32 %s37, 1
          %s143 = scalar_lea.sflag [#allocation4], %s142
          %s144 = sand.u32 %s37, 1
          %s145 = smul.addr %s144, 8
          %s146 = scalar_lea.vmem [#allocation3], %s145
          %s148 = ssub.s32 128, 128
          %149 = vsyncadd %s143, %s148
          %s150 = smul.addr %s22, 128
          %s151 = scalar_lea.hbm %s0, %s150
          %s153 = sshll.u32 %s146, 4
          %s154 = int_to_ptr.vmem [resolvable:$true] %s153
          %156 = dma.hbm_to_vmem [thread:$0]  %s151, 128, %s154, %s143
        $region24: #{tpu_custom_call.1} parent=19 // pred_fallthru
          _
      $region20: #{tpu_custom_call.1} parent=5 // pred_fallthru
        _
      %p157 = scmp.le.s32.totalorder 1, %s15
      %p158 = scmp.lt.s32.totalorder %s15, 3
      %p159 = pnand %p157, %p158
      %p160 = pneg %p159
      // Predicated region
      $region25: #{tpu_custom_call.1} parent=5 // pred_check
        _
      $region26: #{tpu_custom_call.1} parent=5 // pred_check_branch
        %162 = sbr.rel (%p159) target = $region28
      $region27: #{tpu_custom_call.1} parent=5 // pred_region
        %s163 = ssub.s32 %s15, 1
        %s164 = sand.u32 %s40, 1
        %s165 = scalar_lea.sflag [#allocation4], %s164
        %s166 = sand.u32 %s40, 1
        %s167 = smul.addr %s166, 8
        %s168 = scalar_lea.vmem [#allocation3], %s167
        // Predicated region
        $region29: #{tpu_custom_call.1} parent=27 // pred_check
          %p169 = pneg %p53
        $region30: #{tpu_custom_call.1} parent=27 // pred_check_branch
          %171 = sbr.rel (%p169) target = $region32
        $region31: #{tpu_custom_call.1} parent=27 // pred_region
          %172 = dma.done %s165, 128
        $region32: #{tpu_custom_call.1} parent=27 // pred_fallthru
          _
        // Predicated region
        $region33: #{tpu_custom_call.1} parent=27 // pred_check
          %p173 = pneg %p79
        $region34: #{tpu_custom_call.1} parent=27 // pred_check_branch
          %175 = sbr.rel (%p173) target = $region36
        $region35: #{tpu_custom_call.1} parent=27 // pred_region
          %176 = dma.done [#allocation7], 128
        $region36: #{tpu_custom_call.1} parent=27 // pred_fallthru
          _
        %s177 = sand.u32 %s40, 1
        %s178 = scalar_lea.sflag [#allocation4], %s177
        %s179 = sand.u32 %s40, 1
        %s180 = smul.addr %s179, 8
        %s181 = scalar_lea.vmem [#allocation3], %s180
        %p182 = pneg %p53
        %p183 = pneg %p50
        %p184 = pneg %p79
        %p185 = pneg %p76
        %p186 = pneg %p107
        %p187 = pneg %p104
        %s188 = sand.u32 %s94, 1
        %s189 = scalar_lea.sflag [#allocation5], %s188
        %s190 = sand.u32 %s94, 1
        %s191 = smul.addr %s190, 8
        %s192 = scalar_lea.vmem [#allocation8], %s191
        %v193 = vld [vmem:[%s168] sm:$0xff]
        %194 = vst [vmem:[#allocation2] sm:$0xff] %v193
        %195 = vrot.lane.b32.xlu0 %v193, 127
        %v196 = vpop.permute.xlu0 %195
        %197 = vst [vmem:[#allocation2 + $0x8] sm:$0xff] %v196
        %198 = vrot.lane.b32.xlu0 %v193, 126
        %v199 = vpop.permute.xlu0 %198
        %200 = vst [vmem:[#allocation2 + $0x10] sm:$0xff] %v199
        %201 = vrot.lane.b32.xlu0 %v193, 125
        %v202 = vpop.permute.xlu0 %201
        %203 = vst [vmem:[#allocation2 + $0x18] sm:$0xff] %v202
        %204 = vrot.lane.b32.xlu0 %v193, 124
        %v205 = vpop.permute.xlu0 %204
        %206 = vst [vmem:[#allocation2 + $0x20] sm:$0xff] %v205
        %v207 = vld [vmem:[#allocation6] sm:$0xff]
        %v208 = vld [vmem:[#allocation2] sm:$0xff]
        %v209 = vld [vmem:[#allocation2 + $0x8] sm:$0xff]
        %v210 = vld [vmem:[#allocation2 + $0x10] sm:$0xff]
        %v211 = vld [vmem:[#allocation2 + $0x18] sm:$0xff]
        %v212 = vld [vmem:[#allocation2 + $0x20] sm:$0xff]
        %vm213 = vcmask 326656
        %v215 = vsel %vm213, %v207, 0
        %217 = vmatprep.subr.mxu0 0.0
        %218 = vmatpush1.msra.mxu0 0.0
        %219 = vmatprep.subr.mxu0 0.0
        %220 = vmatpush1.msra.mxu0 0.0
        %221 = vmatprep.subr.mxu0 0.0
        %222 = vmatpush1.msra.mxu0 0.0
        %223 = vmatprep.subr.mxu0 0.0
        %224 = vmatpush1.msra.mxu0 0.0
        %225 = vmatprep.subr.mxu0 0.0
        %226 = vmatpush1.msra.mxu0 0.0
        %227 = vmatprep.subr.mxu0 0.0
        %228 = vmatpush1.msra.mxu0 0.0
        %229 = vmatprep.subr.mxu0 0.0
        %230 = vmatpush1.msra.mxu0 0.0
        %231 = vmatprep.subr.mxu0 0.0
        %232 = vmatpush1.msra.mxu0 0.0
        %233 = vmatprep.subr.mxu0 0.0
        %234 = vmatpush1.msra.mxu0 0.0
        %235 = vmatprep.subr.mxu0 0.0
        %236 = vmatpush1.msra.mxu0 0.0
        %237 = vmatprep.subr.mxu0 0.0
        %238 = vmatpush1.msra.mxu0 0.0
        %239 = vmatprep.subr.mxu0 0.0
        %240 = vmatpush1.msra.mxu0 %v212
        %241 = vmatprep.subr.mxu0 0.0
        %242 = vmatpush1.msra.mxu0 %v211
        %243 = vmatprep.subr.mxu0 0.0
        %244 = vmatpush1.msra.mxu0 %v210
        %245 = vmatprep.subr.mxu0 0.0
        %246 = vmatpush1.msra.mxu0 %v209
        %247 = vmatprep.subr.mxu0 0.0
        %248 = vmatpush1.msra.mxu0 %v208
        %249 = vmatprep.subr.mxu0 0.0
        %250 = vmatpush2.msra.mxu0 0.0
        %251 = vmatprep.subr.mxu0 0.0
        %252 = vmatpush2.msra.mxu0 0.0
        %253 = vmatprep.subr.mxu0 0.0
        %254 = vmatpush2.msra.mxu0 0.0
        %255 = vmatprep.subr.mxu0 0.0
        %256 = vmatpush2.msra.mxu0 0.0
        %257 = vmatprep.subr.mxu0 0.0
        %258 = vmatpush2.msra.mxu0 0.0
        %259 = vmatprep.subr.mxu0 0.0
        %260 = vmatpush2.msra.mxu0 0.0
        %261 = vmatprep.subr.mxu0 0.0
        %262 = vmatpush2.msra.mxu0 0.0
        %263 = vmatprep.subr.mxu0 0.0
        %264 = vmatpush2.msra.mxu0 0.0
        %265 = vmatprep.subr.mxu0 0.0
        %266 = vmatpush2.msra.mxu0 0.0
        %267 = vmatprep.subr.mxu0 0.0
        %268 = vmatpush2.msra.mxu0 0.0
        %269 = vmatprep.subr.mxu0 0.0
        %270 = vmatpush2.msra.mxu0 0.0
        %271 = vmatprep.subr.mxu0 0.0
        %272 = vmatpush2.msra.mxu0 0.0
        %273 = vmatprep.subr.mxu0 0.0
        %274 = vmatpush2.msra.mxu0 0.0
        %275 = vmatprep.subr.mxu0 0.0
        %276 = vmatpush2.msra.mxu0 0.0
        %277 = vmatprep.subr.mxu0 0.0
        %278 = vmatpush2.msra.mxu0 0.0
        %279 = vmatprep.subr.mxu0 0.0
        %280 = vmatpush2.msra.mxu0 0.0
        %281 = vmatprep.mubr.f32.mxu0 0.0
        %282 = vmatmul.mubr.f32.gmra.mxu0 %v215
        %v283 = vpop.f32.mrf.mxu0
        %v284 = vadd.f32 0.0, %v283
        %v285 = vpop.f32.mrf.mxu0
        %286 = vdwg.mxu0
        %287 = vst [vmem:[%s192] sm:$0xff] %v284
        %s288 = sand.u32 %s94, 1
        %s289 = scalar_lea.sflag [#allocation5], %s288
        %s290 = sand.u32 %s94, 1
        %s291 = smul.addr %s290, 8
        %s292 = scalar_lea.vmem [#allocation8], %s291
        // Predicated region
        $region37: #{tpu_custom_call.1} parent=27 // pred_check
          %p293 = pneg %p104
        $region38: #{tpu_custom_call.1} parent=27 // pred_check_branch
          %295 = sbr.rel (%p293) target = $region40
        $region39: #{tpu_custom_call.1} parent=27 // pred_region
          %s297 = ssub.s32 128, 128
          %298 = vsyncadd %s289, %s297
          %s299 = smul.addr %s25, 2
          %s300 = sadd.s32 %s24, %s299
          %s301 = smul.addr %s300, 128
          %s302 = scalar_lea.hbm %s2, %s301
          %s304 = sshll.u32 %s292, 4
          %s305 = int_to_ptr.vmem [resolvable:$true] %s304
          %307 = dma.vmem_to_hbm [thread:$0]  %s305, 128, %s302, %s289
        $region40: #{tpu_custom_call.1} parent=27 // pred_fallthru
          _
      $region28: #{tpu_custom_call.1} parent=5 // pred_fallthru
        _
      %p308 = scmp.le.s32.totalorder 2, %s15
      // Predicated region
      $region41: #{tpu_custom_call.1} parent=5 // pred_check
        %p309 = pneg %p308
      $region42: #{tpu_custom_call.1} parent=5 // pred_check_branch
        %311 = sbr.rel (%p309) target = $region44
      $region43: #{tpu_custom_call.1} parent=5 // pred_region
        %s312 = ssub.s32 %s15, 2
        // Predicated region
        $region45: #{tpu_custom_call.1} parent=43 // pred_check
          %p313 = pneg %p110
        $region46: #{tpu_custom_call.1} parent=43 // pred_check_branch
          %315 = sbr.rel (%p313) target = $region48
        $region47: #{tpu_custom_call.1} parent=43 // pred_region
          %s316 = sand.u32 %s95, 1
          %s317 = scalar_lea.sflag [#allocation5], %s316
          %s318 = sand.u32 %s95, 1
          %s319 = smul.addr %s318, 8
          %s320 = scalar_lea.vmem [#allocation8], %s319
          %321 = dma.done %s317, 128
        $region48: #{tpu_custom_call.1} parent=43 // pred_fallthru
          _
      $region44: #{tpu_custom_call.1} parent=5 // pred_fallthru
        _
    $region6: #{tpu_custom_call.1} parent=1 // loop_footer
      %s19 = sadd.s32 1, %s15
    $region7: #{tpu_custom_call.1} parent=1 // loop_footer_branch
      %14 = sbr.rel target = $region3
    $region8: #{tpu_custom_call.1} parent=1 // loop_exit
      _
    %322 = vsyncpa [#allocation4], 1
    %s323 = scalar_lea.sflag [#allocation4], 1
    %324 = vsyncpa %s323, 1
    %325 = vsyncpa [#allocation7], 1
    %326 = vsyncpa [#allocation5], 1
    %s327 = scalar_lea.sflag [#allocation5], 1
    %328 = vsyncpa %s327, 1

</llo_original>
